<compile_context>
chip_gen: v7x
topology: tpu7x:2x2x1
jax: 0.10.0
libtpu: 0.0.40
codegen_flags: <defaults>
</compile_context>

<pallas_src>
import jax
import jax.numpy as jnp
from jax.experimental import pallas as pl


LANE = 128  # TPU lane width; pad MXU-facing dims to a multiple of this.


def _round_up(n, m):
    return ((n + m - 1) // m) * m


def _mlp_kernel(x_ref, w1_ref, b1_ref, w2_ref, b2_ref, o_ref):
    # fc1: (B, F) @ (F, H_pad) on the MXU in bf16, accumulate in f32.
    x = x_ref[...].astype(w1_ref.dtype)
    h = jnp.dot(x, w1_ref[...], preferred_element_type=jnp.float32)
    # Bias + ReLU on the VPU in f32 (padded hidden columns are 0 + 0 -> stay 0).
    h = jnp.maximum(h + b1_ref[...], 0.0)
    # Dropout (p=0.2) in eval mode == identity.
    # fc2: (B, H_pad) @ (H_pad, C_pad) on the MXU in bf16, accumulate in f32.
    out = jnp.dot(h.astype(w2_ref.dtype), w2_ref[...],
                  preferred_element_type=jnp.float32)
    # Emit only the logical C columns (static from the output ref shape).
    C = o_ref.shape[1]
    o_ref[...] = (out[:, :C] + b2_ref[...]).astype(o_ref.dtype)


def prepare_params(w1, b1, w2, b2):
    """One-time parameter preparation (hoisted out of the forward pass).

    PyTorch layout in:  w1 (H, F), b1 (H,), w2 (C, H), b2 (C,).
    Stored layout out:  w1_t (F, H_pad) bf16, b1 (1, H_pad) f32,
                        w2_t (H_pad, C_pad) bf16, b2 (1, C) f32.
    Padding is with zeros, so padded hidden units contribute nothing.
    """
    H, F = w1.shape
    C = w2.shape[0]
    H_pad = _round_up(H, LANE)
    C_pad = _round_up(C, LANE)

    w1_t = jnp.zeros((F, H_pad), jnp.bfloat16).at[:, :H].set(
        w1.T.astype(jnp.bfloat16))
    b1_p = jnp.zeros((1, H_pad), jnp.float32).at[0, :H].set(
        b1.astype(jnp.float32))
    w2_t = jnp.zeros((H_pad, C_pad), jnp.bfloat16).at[:H, :C].set(
        w2.T.astype(jnp.bfloat16))
    b2_p = b2.astype(jnp.float32).reshape(1, C)
    return dict(w1_t=w1_t, b1=b1_p, w2_t=w2_t, b2=b2_p)


def custom_classifier_forward(x, params):
    """x: (B, F) float; params: output of prepare_params. Returns (B, C)."""
    B, F = x.shape
    w1_t = params["w1_t"]          # (F, H_pad) bf16
    b1 = params["b1"]              # (1, H_pad) f32
    w2_t = params["w2_t"]          # (H_pad, C_pad) bf16
    b2 = params["b2"]              # (1, C) f32
    H_pad = w1_t.shape[1]
    C_pad = w2_t.shape[1]
    C = b2.shape[1]

    # Single program: whole problem (~50 KiB) fits trivially in VMEM.
    full = lambda shape: pl.BlockSpec(shape, lambda: tuple(0 for _ in shape))

    return pl.pallas_call(
        _mlp_kernel,
        out_shape=jax.ShapeDtypeStruct((B, C), x.dtype),
        grid=(),
        in_specs=[
            full((B, F)),
            full((F, H_pad)),
            full((1, H_pad)),
            full((H_pad, C_pad)),
            full((1, C)),
        ],
        out_specs=full((B, C)),
    )(x, w1_t, b1, w2_t, b2)


def _reference(x, w1, b1, w2, b2):
    h = jnp.maximum(x @ w1.T + b1, 0.0)
    return h @ w2.T + b2


if __name__ == "__main__":
    # Small shapes implied by the module: batch=8, input_features=32,
    # hidden_features=64, num_classes=16.
    B, F, H, C = 8, 32, 64, 16

    key = jax.random.PRNGKey(0)
    kx, kw1, kb1, kw2, kb2 = jax.random.split(key, 5)

    x = jax.random.normal(kx, (B, F), dtype=jnp.float32)
    # Deterministic parameter init (uniform, PyTorch Linear-like bounds).
    w1 = jax.random.uniform(kw1, (H, F), minval=-1.0 / F ** 0.5,
                            maxval=1.0 / F ** 0.5, dtype=jnp.float32)
    b1 = jax.random.uniform(kb1, (H,), minval=-1.0 / F ** 0.5,
                            maxval=1.0 / F ** 0.5, dtype=jnp.float32)
    w2 = jax.random.uniform(kw2, (C, H), minval=-1.0 / H ** 0.5,
                            maxval=1.0 / H ** 0.5, dtype=jnp.float32)
    b2 = jax.random.uniform(kb2, (C,), minval=-1.0 / H ** 0.5,
                            maxval=1.0 / H ** 0.5, dtype=jnp.float32)

    # One-time parameter preparation (transpose + padding + bf16 cast hoisted).
    params = jax.block_until_ready(prepare_params(w1, b1, w2, b2))

    fwd = jax.jit(custom_classifier_forward)
    out = jax.block_until_ready(fwd(x, params))

    ref = _reference(x, w1, b1, w2, b2)
    assert out.shape == (B, C), out.shape
    # bf16 weights/activations on the MXU (f32 accumulation) -> relaxed tol.
    assert jnp.allclose(out, ref, atol=3e-2, rtol=3e-2), "mismatch vs reference"

    print("KERNEL_OK")
</pallas_src>

<mosaic_0001>
module attributes {stable_mosaic.version = 11 : i64} {
  func.func @_mlp_kernel(%arg0: memref<8x32xf32, #tpu.memory_space<vmem>>, %arg1: memref<32x128xbf16, #tpu.memory_space<vmem>>, %arg2: memref<1x128xf32, #tpu.memory_space<vmem>>, %arg3: memref<128x128xbf16, #tpu.memory_space<vmem>>, %arg4: memref<1x16xf32, #tpu.memory_space<vmem>>, %arg5: memref<8x16xf32, #tpu.memory_space<vmem>>) attributes {dimension_semantics = [], scalar_prefetch = 0 : i64, scratch_operands = 0 : i64, tpu.core_type = #tpu.core_type<tc>} {
    %c0 = arith.constant 0 : index
    %c0_0 = arith.constant 0 : index
    %0 = vector.load %arg0[%c0, %c0_0] : memref<8x32xf32, #tpu.memory_space<vmem>>, vector<8x32xf32>
    %1 = arith.truncf %0 : vector<8x32xf32> to vector<8x32xbf16>
    %c0_1 = arith.constant 0 : index
    %c0_2 = arith.constant 0 : index
    %2 = vector.load %arg1[%c0_1, %c0_2] : memref<32x128xbf16, #tpu.memory_space<vmem>>, vector<32x128xbf16>
    %cst = arith.constant dense<0.000000e+00> : vector<8x128xf32>
    %3 = tpu.matmul %1, %2, %cst {dimension_numbers = #tpu.dot_dimension_numbers<[1], [0], [0], [1], [0, 0, 1, 1], [], []>} : vector<8x32xbf16>, vector<32x128xbf16>, vector<8x128xf32> -> vector<8x128xf32>
    %c0_3 = arith.constant 0 : index
    %c0_4 = arith.constant 0 : index
    %4 = vector.load %arg2[%c0_3, %c0_4] : memref<1x128xf32, #tpu.memory_space<vmem>>, vector<1x128xf32>
    %5 = vector.broadcast %4 : vector<1x128xf32> to vector<8x128xf32>
    %6 = arith.addf %3, %5 : vector<8x128xf32>
    %cst_5 = arith.constant 0.000000e+00 : f32
    %7 = vector.broadcast %cst_5 : f32 to vector<8x128xf32>
    %8 = arith.maximumf %6, %7 : vector<8x128xf32>
    %9 = arith.truncf %8 : vector<8x128xf32> to vector<8x128xbf16>
    %c0_6 = arith.constant 0 : index
    %c0_7 = arith.constant 0 : index
    %10 = vector.load %arg3[%c0_6, %c0_7] : memref<128x128xbf16, #tpu.memory_space<vmem>>, vector<128x128xbf16>
    %cst_8 = arith.constant dense<0.000000e+00> : vector<8x128xf32>
    %11 = tpu.matmul %9, %10, %cst_8 {dimension_numbers = #tpu.dot_dimension_numbers<[1], [0], [0], [1], [0, 0, 1, 1], [], []>} : vector<8x128xbf16>, vector<128x128xbf16>, vector<8x128xf32> -> vector<8x128xf32>
    %12 = vector.extract_strided_slice %11 {offsets = [0, 0], sizes = [8, 16], strides = [1, 1]} : vector<8x128xf32> to vector<8x16xf32>
    %c0_9 = arith.constant 0 : index
    %c0_10 = arith.constant 0 : index
    %13 = vector.load %arg4[%c0_9, %c0_10] : memref<1x16xf32, #tpu.memory_space<vmem>>, vector<1x16xf32>
    %14 = vector.broadcast %13 : vector<1x16xf32> to vector<8x16xf32>
    %15 = arith.addf %12, %14 : vector<8x16xf32>
    %c0_11 = arith.constant 0 : index
    %c0_12 = arith.constant 0 : index
    %16 = vector.load %arg5[%c0_11, %c0_12] : memref<8x16xf32, #tpu.memory_space<vmem>>, vector<8x16xf32>
    tpu.vector_store %arg5[%c0_11, %c0_12], %15 {strides = array<i32>} : memref<8x16xf32, #tpu.memory_space<vmem>>, vector<8x16xf32>,
    return
  }
}

</mosaic_0001>

<llo_original>
// kernel: custom_classifier_forward.1
$region0: #{custom_classifier_forward.1}
  #allocation0 [shape = 'u32[]', space=smem, size = 0x4, offset = 0x4, fixed_abs, tag = 'smem constant byte address 0x4 - core index']
  #allocation1 [shape = 'u32[144,128]{1,0:T(1,128)}', space=vmem, size = 0x12000, scoped, tag = 'internal scratch']
  %s0 = inlined_call_operand.hbm [shape: f32[8,32], index: 0, kind: input, shape index: {}]
  %s1 = inlined_call_operand.hbm [shape: bf16[32,128], index: 1, kind: input, shape index: {}]
  %s2 = inlined_call_operand.vmem [shape: f32[1,128], index: 2, kind: input, shape index: {}]
  %s3 = inlined_call_operand.hbm [shape: bf16[128,128], index: 3, kind: input, shape index: {}]
  %s4 = inlined_call_operand.vmem [shape: f32[1,16], index: 4, kind: input, shape index: {}]
  %s5 = inlined_call_operand.hbm [shape: f32[8,16], index: 5, kind: output, shape index: {}]
  %s6 = sld [smem:[#allocation0]]
  $region42: #{custom_classifier_forward.1} parent=0
    _
  %s8 = ssub.s32 1, %s6
  %s9 = scalar_select 0, %s8, %s6
  $region1: #{custom_classifier_forward.1} parent=0
    #allocation2 [shape = 'u8[4096]{0}', space=vmem, size = 0x1000, scoped, tag = 'input window, operand 0, single buffered']
    #allocation3 [shape = 's32[1]{0}', space=sflag, size = 0x4, scoped, tag = 'scoped memory for custom_classifier_forward.1']
    #allocation4 [shape = 's32[1]{0}', space=sflag, size = 0x4, scoped, tag = 'scoped memory for custom_classifier_forward.1']
    #allocation5 [shape = 'u8[8192]{0}', space=vmem, size = 0x2000, scoped, tag = 'input window, operand 1, single buffered']
    #allocation6 [shape = 's32[1]{0}', space=sflag, size = 0x4, scoped, tag = 'scoped memory for custom_classifier_forward.1']
    #allocation7 [shape = 'u8[32768]{0}', space=vmem, size = 0x8000, scoped, tag = 'input window, operand 3, single buffered']
    #allocation8 [shape = 'u8[4096]{0}', space=vmem, size = 0x1000, scoped, tag = 'output window, operand 0, single buffered']
    %10 = vsyncpa [#allocation3], 0
    %11 = vsyncpa [#allocation6], 0
    %12 = vsyncpa [#allocation4], 0
    // Predicated region
    $region2: #{custom_classifier_forward.1} parent=1 // pred_check
      _
    $region3: #{custom_classifier_forward.1} parent=1 // pred_check_branch
      %14 = sbr.rel (0) target = $region5
    $region4: #{custom_classifier_forward.1} parent=1 // pred_region
      %s16 = ssub.s32 128, 128
      %17 = vsyncadd [#allocation3], %s16
      %s19 = sshll.u32 [#allocation2], 4
      %s20 = int_to_ptr.vmem [resolvable:$true] %s19
      %22 = dma.hbm_to_vmem [thread:$0]  %s0, 128, %s20, [#allocation3]
    $region5: #{custom_classifier_forward.1} parent=1 // pred_fallthru
      _
    // Predicated region
    $region6: #{custom_classifier_forward.1} parent=1 // pred_check
      _
    $region7: #{custom_classifier_forward.1} parent=1 // pred_check_branch
      %24 = sbr.rel (0) target = $region9
    $region8: #{custom_classifier_forward.1} parent=1 // pred_region
      %s26 = ssub.s32 256, 256
      %27 = vsyncadd [#allocation6], %s26
      %s28 = sshll.u32 [#allocation5], 4
      %s29 = int_to_ptr.vmem [resolvable:$true] %s28
      %34 = dma.hbm_to_vmem [thread:$0]  %s1, 256, %s29, [#allocation6], 64, 64, 4
    $region9: #{custom_classifier_forward.1} parent=1 // pred_fallthru
      _
    // Predicated region
    $region10: #{custom_classifier_forward.1} parent=1 // pred_check
      _
    $region11: #{custom_classifier_forward.1} parent=1 // pred_check_branch
      %36 = sbr.rel (0) target = $region13
    $region12: #{custom_classifier_forward.1} parent=1 // pred_region
      _
    $region13: #{custom_classifier_forward.1} parent=1 // pred_fallthru
      _
    // Predicated region
    $region14: #{custom_classifier_forward.1} parent=1 // pred_check
      _
    $region15: #{custom_classifier_forward.1} parent=1 // pred_check_branch
      %38 = sbr.rel (0) target = $region17
    $region16: #{custom_classifier_forward.1} parent=1 // pred_region
      %s40 = ssub.s32 1024, 1024
      %41 = vsyncadd [#allocation6], %s40
      %s42 = sshll.u32 [#allocation7], 4
      %s43 = int_to_ptr.vmem [resolvable:$true] %s42
      %48 = dma.hbm_to_vmem [thread:$0]  %s3, 1024, %s43, [#allocation6], 64, 64, 4
    $region17: #{custom_classifier_forward.1} parent=1 // pred_fallthru
      _
    // Predicated region
    $region18: #{custom_classifier_forward.1} parent=1 // pred_check
      _
    $region19: #{custom_classifier_forward.1} parent=1 // pred_check_branch
      %50 = sbr.rel (0) target = $region21
    $region20: #{custom_classifier_forward.1} parent=1 // pred_region
      _
    $region21: #{custom_classifier_forward.1} parent=1 // pred_fallthru
      _
    // Predicated region
    $region22: #{custom_classifier_forward.1} parent=1 // pred_check
      _
    $region23: #{custom_classifier_forward.1} parent=1 // pred_check_branch
      %52 = sbr.rel (0) target = $region25
    $region24: #{custom_classifier_forward.1} parent=1 // pred_region
      %53 = dma.done [#allocation3], 128
    $region25: #{custom_classifier_forward.1} parent=1 // pred_fallthru
      _
    // Predicated region
    $region26: #{custom_classifier_forward.1} parent=1 // pred_check
      _
    $region27: #{custom_classifier_forward.1} parent=1 // pred_check_branch
      %55 = sbr.rel (0) target = $region29
    $region28: #{custom_classifier_forward.1} parent=1 // pred_region
      %56 = dma.done [#allocation6], 256
    $region29: #{custom_classifier_forward.1} parent=1 // pred_fallthru
      _
    // Predicated region
    $region30: #{custom_classifier_forward.1} parent=1 // pred_check
      _
    $region31: #{custom_classifier_forward.1} parent=1 // pred_check_branch
      %58 = sbr.rel (0) target = $region33
    $region32: #{custom_classifier_forward.1} parent=1 // pred_region
      %59 = dma.done [#allocation6], 1024
    $region33: #{custom_classifier_forward.1} parent=1 // pred_fallthru
      _
    %v61 = vld [vmem:[#allocation2] sm:$0xff]
    %v62 = vpack.c.bf16 %v61, %v61
    %v63 = vld [vmem:[#allocation5] sm:$0xf]
    %v64 = vld [vmem:[#allocation5 + $0x4] sm:$0xf]
    %v65 = vld [vmem:[#allocation5 + $0x8] sm:$0xf]
    %v66 = vld [vmem:[#allocation5 + $0xc] sm:$0xf]
    %v67 = vld [vmem:[%s2] sm:$0x1]
    %v69 = vlaneseq
    %v70 = vshrl.u32 %v69, 7
    %v71 = vsub.s32 0, %v70
    %v72 = vrot.slane %v67, %v71
    %v78 = vunpack.c.l.b16 %v63
    %v79 = vunpack.c.l.b16 %v64
    %v80 = vunpack.c.l.b16 %v65
    %v81 = vunpack.c.l.b16 %v66
    %v82 = vpack.c.b16 %v79, %v78
    %v83 = vpack.c.b16 %v81, %v80
    %vm86 = vcmask 261120
    %v88 = vsel %vm86, %v62, 0
    %90 = vmatprep.subr.bf16.mxu0 0
    %91 = vmatpush1.bf16.msra.mxu0 %v82
    %92 = vmatprep.subr.bf16.mxu0 0
    %93 = vmatpush1.bf16.msra.mxu0 %v83
    %94 = vmatprep.subr.bf16.mxu0 0
    %95 = vmatpush1.bf16.msra.mxu0 0
    %96 = vmatprep.subr.bf16.mxu0 0
    %97 = vmatpush1.bf16.msra.mxu0 0
    %98 = vmatprep.subr.bf16.mxu0 0
    %99 = vmatpush1.bf16.msra.mxu0 0
    %100 = vmatprep.subr.bf16.mxu0 0
    %101 = vmatpush1.bf16.msra.mxu0 0
    %102 = vmatprep.subr.bf16.mxu0 0
    %103 = vmatpush1.bf16.msra.mxu0 0
    %104 = vmatprep.subr.bf16.mxu0 0
    %105 = vmatpush1.bf16.msra.mxu0 0
    %106 = vmatprep.subr.bf16.mxu0 0
    %107 = vmatpush1.bf16.msra.mxu0 0
    %108 = vmatprep.subr.bf16.mxu0 0
    %109 = vmatpush1.bf16.msra.mxu0 0
    %110 = vmatprep.subr.bf16.mxu0 0
    %111 = vmatpush1.bf16.msra.mxu0 0
    %112 = vmatprep.subr.bf16.mxu0 0
    %113 = vmatpush1.bf16.msra.mxu0 0
    %114 = vmatprep.subr.bf16.mxu0 0
    %115 = vmatpush1.bf16.msra.mxu0 0
    %116 = vmatprep.subr.bf16.mxu0 0
    %117 = vmatpush1.bf16.msra.mxu0 0
    %118 = vmatprep.subr.bf16.mxu0 0
    %119 = vmatpush1.bf16.msra.mxu0 0
    %120 = vmatprep.subr.bf16.mxu0 0
    %121 = vmatpush1.bf16.msra.mxu0 0
    %122 = vmatprep.mubr.bf16.mxu0 0
    %123 = vmatmul.mubr.bf16.gmra.mrb[0].mxu0 %v88
    %v124 = vpop.f32.mrb[0].mxu0
    %v125 = vadd.f32 %v72, %v124
    %v126 = vpop.f32.mrb[0].mxu0
    %v127 = vpop.f32.mrb[0].mxu0
    %v128 = vpop.f32.mrb[0].mxu0
    %129 = vdwg.mxu0
    %v130 = vmax.f32 %v125, 0.0
    %v131 = vpack.c.bf16 %v130, %v130
    %v132 = vld [vmem:[#allocation7] sm:$0xf]
    %v133 = vld [vmem:[#allocation7 + $0x4] sm:$0xf]
    %v134 = vld [vmem:[#allocation7 + $0x8] sm:$0xf]
    %v135 = vld [vmem:[#allocation7 + $0xc] sm:$0xf]
    %v136 = vld [vmem:[#allocation7 + $0x10] sm:$0xf]
    %v137 = vld [vmem:[#allocation7 + $0x14] sm:$0xf]
    %v138 = vld [vmem:[#allocation7 + $0x18] sm:$0xf]
    %v139 = vld [vmem:[#allocation7 + $0x1c] sm:$0xf]
    %v140 = vld [vmem:[#allocation7 + $0x20] sm:$0xf]
    %v141 = vld [vmem:[#allocation7 + $0x24] sm:$0xf]
    %v142 = vld [vmem:[#allocation7 + $0x28] sm:$0xf]
    %v143 = vld [vmem:[#allocation7 + $0x2c] sm:$0xf]
    %v144 = vld [vmem:[#allocation7 + $0x30] sm:$0xf]
    %v145 = vld [vmem:[#allocation7 + $0x34] sm:$0xf]
    %v146 = vld [vmem:[#allocation7 + $0x38] sm:$0xf]
    %v147 = vld [vmem:[#allocation7 + $0x3c] sm:$0xf]
    %v164 = vunpack.c.l.b16 %v132
    %v165 = vunpack.c.l.b16 %v133
    %v166 = vunpack.c.l.b16 %v134
    %v167 = vunpack.c.l.b16 %v135
    %v168 = vunpack.c.l.b16 %v136
    %v169 = vunpack.c.l.b16 %v137
    %v170 = vunpack.c.l.b16 %v138
    %v171 = vunpack.c.l.b16 %v139
    %v172 = vunpack.c.l.b16 %v140
    %v173 = vunpack.c.l.b16 %v141
    %v174 = vunpack.c.l.b16 %v142
    %v175 = vunpack.c.l.b16 %v143
    %v176 = vunpack.c.l.b16 %v144
    %v177 = vunpack.c.l.b16 %v145
    %v178 = vunpack.c.l.b16 %v146
    %v179 = vunpack.c.l.b16 %v147
    %v180 = vpack.c.b16 %v165, %v164
    %v181 = vpack.c.b16 %v167, %v166
    %v182 = vpack.c.b16 %v169, %v168
    %v183 = vpack.c.b16 %v171, %v170
    %v184 = vpack.c.b16 %v173, %v172
    %v185 = vpack.c.b16 %v175, %v174
    %v186 = vpack.c.b16 %v177, %v176
    %v187 = vpack.c.b16 %v179, %v178
    %196 = vmatprep.subr.bf16.mxu0 0
    %197 = vmatpush1.bf16.msra.mxu0 %v180
    %198 = vmatprep.subr.bf16.mxu0 0
    %199 = vmatpush1.bf16.msra.mxu0 %v181
    %200 = vmatprep.subr.bf16.mxu0 0
    %201 = vmatpush1.bf16.msra.mxu0 %v182
    %202 = vmatprep.subr.bf16.mxu0 0
    %203 = vmatpush1.bf16.msra.mxu0 %v183
    %204 = vmatprep.subr.bf16.mxu0 0
    %205 = vmatpush1.bf16.msra.mxu0 %v184
    %206 = vmatprep.subr.bf16.mxu0 0
    %207 = vmatpush1.bf16.msra.mxu0 %v185
    %208 = vmatprep.subr.bf16.mxu0 0
    %209 = vmatpush1.bf16.msra.mxu0 %v186
    %210 = vmatprep.subr.bf16.mxu0 0
    %211 = vmatpush1.bf16.msra.mxu0 %v187
    %212 = vmatprep.subr.bf16.mxu0 0
    %213 = vmatpush1.bf16.msra.mxu0 0
    %214 = vmatprep.subr.bf16.mxu0 0
    %215 = vmatpush1.bf16.msra.mxu0 0
    %216 = vmatprep.subr.bf16.mxu0 0
    %217 = vmatpush1.bf16.msra.mxu0 0
    %218 = vmatprep.subr.bf16.mxu0 0
    %219 = vmatpush1.bf16.msra.mxu0 0
    %220 = vmatprep.subr.bf16.mxu0 0
    %221 = vmatpush1.bf16.msra.mxu0 0
    %222 = vmatprep.subr.bf16.mxu0 0
    %223 = vmatpush1.bf16.msra.mxu0 0
    %224 = vmatprep.subr.bf16.mxu0 0
    %225 = vmatpush1.bf16.msra.mxu0 0
    %226 = vmatprep.subr.bf16.mxu0 0
    %227 = vmatpush1.bf16.msra.mxu0 0
    %228 = vmatprep.mubr.bf16.mxu0 0
    %229 = vmatmul.mubr.bf16.gmra.mrb[0].mxu0 %v131
    %v230 = vpop.f32.mrb[0].mxu0
    %v231 = vadd.f32 0.0, %v230
    %v232 = vpop.f32.mrb[0].mxu0
    %v233 = vpop.f32.mrb[0].mxu0
    %v234 = vpop.f32.mrb[0].mxu0
    %235 = vdwg.mxu0
    %v236 = vld [vmem:[%s4] sm:$0x1]
    %v238 = vlaneseq
    %v239 = vshrl.u32 %v238, 7
    %v240 = vsub.s32 0, %v239
    %v241 = vrot.slane %v236, %v240
    %v243 = vadd.f32 %v231, %v241
    %vm244 = vcmask 130048
    %245 = vst.msk [vmem:[#allocation8] sm:$0xff] %vm244, %v243
    // Predicated region
    $region34: #{custom_classifier_forward.1} parent=1 // pred_check
      _
    $region35: #{custom_classifier_forward.1} parent=1 // pred_check_branch
      %247 = sbr.rel (0) target = $region37
    $region36: #{custom_classifier_forward.1} parent=1 // pred_region
      %s249 = ssub.s32 128, 128
      %250 = vsyncadd [#allocation4], %s249
      %s252 = sshll.u32 [#allocation8], 4
      %s253 = int_to_ptr.vmem [resolvable:$true] %s252
      %255 = dma.vmem_to_hbm [thread:$0]  %s253, 128, %s5, [#allocation4]
    $region37: #{custom_classifier_forward.1} parent=1 // pred_fallthru
      _
    // Predicated region
    $region38: #{custom_classifier_forward.1} parent=1 // pred_check
      _
    $region39: #{custom_classifier_forward.1} parent=1 // pred_check_branch
      %257 = sbr.rel (0) target = $region41
    $region40: #{custom_classifier_forward.1} parent=1 // pred_region
      %258 = dma.done [#allocation4], 128
    $region41: #{custom_classifier_forward.1} parent=1 // pred_fallthru
      _
    %259 = vsyncpa [#allocation3], 1
    %260 = vsyncpa [#allocation6], 1
    %261 = vsyncpa [#allocation4], 1

</llo_original>
